<compile_context>
chip_gen: v6e
topology: v6e:2x2x1
jax: 0.10.0
libtpu: 0.0.40
codegen_flags: <defaults>
</compile_context>

<pallas_src>
import functools

import jax
import jax.numpy as jnp
from jax import lax
from jax.experimental import pallas as pl
from jax.experimental.pallas import tpu as pltpu


def att_head_kernel(xq_ref, xkv_ref, wq_ref, wkv_ref, o_ref, kv_ref, *,
                    hp, mxu_dtype, persist_kv, exact_norm):
    # xq_ref : (1, TQ, E)   query tile of x                (mxu_dtype)
    # xkv_ref: (1, T,  E)   full sequence for K/V          (mxu_dtype)
    # wq_ref : (E, Hp)      padded wq with E**-0.5 folded  (mxu_dtype)
    # wkv_ref: (E, 2*Hp)    padded, fused [wk | wv]        (mxu_dtype)
    # o_ref  : (1, TQ, Hp)  output tile                    (out dtype)
    # kv_ref : (T, 2*Hp)    persistent K/V scratch         (mxu_dtype)

    def project_kv():
        # Single fused projection: (T, E) @ (E, 2*Hp) on the MXU, f32 accumulate.
        kv = jnp.dot(xkv_ref[0], wkv_ref[...], preferred_element_type=jnp.float32)
        kv_ref[...] = kv.astype(kv_ref.dtype)

    if persist_kv:
        # K/V depend only on the batch index; compute once per batch (t == 0) and
        # reuse for every query tile.  Requires the t axis to be "arbitrary".
        pl.when(pl.program_id(1) == 0)(project_kv)
    else:
        # B == 1 path: recompute per tile so the t axis can be megacore-parallel.
        project_kv()

    # Q projection for this tile (scale already folded into wq).
    q = jnp.dot(xq_ref[0], wq_ref[...], preferred_element_type=jnp.float32)  # (TQ, Hp)

    k = kv_ref[:, :hp]           # (T, Hp) mxu_dtype — aligned static slice
    v = kv_ref[:, hp:2 * hp]     # (T, Hp) mxu_dtype

    # q @ k^T without materializing k.T: contract last dims of both operands.
    s = lax.dot_general(
        q.astype(mxu_dtype), k,
        dimension_numbers=(((1,), (1,)), ((), ())),
        preferred_element_type=jnp.float32)                 # (TQ, T) f32

    # Numerically stable softmax numerator in f32 (VPU/EUP).
    # TODO(synk): on v6e/v7x the exp pass is the likely binding unit at Hp=128; a
    #             bf16 exp would ~2x EUP throughput if tolerance allows.
    s = s - jnp.max(s, axis=-1, keepdims=True)
    p = jnp.exp(s)                                          # (TQ, T) f32, unnormalized
    l = jnp.sum(p, axis=-1, keepdims=True)                  # (TQ, 1)

    # PV matmul on unnormalized probabilities, then normalize the (TQ, Hp) result.
    out = jnp.dot(p.astype(mxu_dtype), v, preferred_element_type=jnp.float32)
    if exact_norm:
        inv_l = 1.0 / l
    else:
        inv_l = pl.reciprocal(l, approx=True)               # EUP slot; (TQ,1) only
    o_ref[0] = (out * inv_l).astype(o_ref.dtype)


def _pick_tq(T, tq_req):
    """Largest divisor of T <= tq_req that satisfies the sublane constraint."""
    tq_req = max(1, min(int(tq_req), T))
    for cand in range(tq_req, 0, -1):
        if T % cand == 0 and (cand % 8 == 0 or cand == T):
            return cand
    return T  # fallback: full sequence (always legal for the BlockSpec)


def _vmem_budget_bytes(T, E, tq, hp, mxu_itemsize, out_itemsize):
    ins = 2 * (tq * E + T * E + E * hp + E * 2 * hp) * mxu_itemsize  # double-buffered
    outs = 2 * tq * hp * out_itemsize
    scratch = T * 2 * hp * mxu_itemsize                               # persistent K/V
    interm = tq * T * (4 + 4 + mxu_itemsize) + 4 * tq * hp * 4        # s, p, p_cast, q/out
    return ins + outs + scratch + interm


def att_head(x, wq, wk, wv, *, tq=512, mxu_dtype=jnp.bfloat16, out_dtype=None,
             exact_norm=None, vmem_limit_bytes=None):
    """x: (B, T, E); wq/wk/wv: (E, H) -> (B, T, H).

    mxu_dtype: dtype fed to the MXU (bf16 recommended on v6e/v7x); accumulation is
    always f32 and softmax math stays f32.  exact_norm=None -> exact 1/l division
    for the f32-MXU path, approximate EUP reciprocal for the bf16 path.
    """
    B, T, E = x.shape
    E2, H = wq.shape
    assert E2 == E and wk.shape == (E, H) and wv.shape == (E, H)
    if out_dtype is None:
        out_dtype = x.dtype
    if exact_norm is None:
        exact_norm = (jnp.dtype(mxu_dtype) == jnp.dtype(jnp.float32))

    # NOTE: scale is emb_dim**-0.5, intentionally matching the PyTorch module
    # (which scales by E**-0.5, not head_size**-0.5).
    scale = float(E) ** -0.5

    # Pad head dim to a multiple of 128: lane-dense output, full MXU N width.
    # Zero weight columns are exact no-ops and are sliced off at the end.
    Hp = ((H + 127) // 128) * 128
    if Hp != H:
        pad = ((0, 0), (0, Hp - H))
        wq = jnp.pad(wq, pad)
        wk = jnp.pad(wk, pad)
        wv = jnp.pad(wv, pad)

    # Fold the attention scale into wq (one-time constant scaling, done in f32).
    wq_s = (wq * scale).astype(mxu_dtype)
    # Fuse K and V weights -> a single projection matmul with N = 2*Hp.
    wkv = jnp.concatenate([wk, wv], axis=1).astype(mxu_dtype)
    xm = x.astype(mxu_dtype)

    tq = _pick_tq(T, tq)
    nq = T // tq

    # Persist K/V across query tiles unless that would leave a v7x TensorCore idle
    # (B == 1 with several tiles): then recompute per tile and parallelize t.
    persist_kv = (B > 1) or (nq == 1)
    dims = ("parallel", "arbitrary") if persist_kv else ("parallel", "parallel")

    if vmem_limit_bytes is None:
        est = _vmem_budget_bytes(T, E, tq, Hp,
                                 jnp.dtype(mxu_dtype).itemsize,
                                 jnp.dtype(out_dtype).itemsize)
        vmem_limit_bytes = int(min(max(3 * est // 2 + (2 << 20), 32 << 20), 56 << 20))

    kernel = functools.partial(att_head_kernel, hp=Hp, mxu_dtype=mxu_dtype,
                               persist_kv=persist_kv, exact_norm=exact_norm)

    out = pl.pallas_call(
        kernel,
        out_shape=jax.ShapeDtypeStruct((B, T, Hp), out_dtype),
        grid_spec=pltpu.PrefetchScalarGridSpec(
            num_scalar_prefetch=0,
            grid=(B, nq),
            in_specs=[
                pl.BlockSpec((1, tq, E), lambda b, t: (b, t, 0)),   # query tile of x
                # Full-seq x for K/V: block index is constant in t, so it is only
                # re-fetched when b changes.
                pl.BlockSpec((1, T, E), lambda b, t: (b, 0, 0)),
                pl.BlockSpec((E, Hp), lambda b, t: (0, 0)),         # scaled wq
                pl.BlockSpec((E, 2 * Hp), lambda b, t: (0, 0)),     # fused [wk | wv]
            ],
            out_specs=pl.BlockSpec((1, tq, Hp), lambda b, t: (b, t, 0)),
            scratch_shapes=[pltpu.VMEM((T, 2 * Hp), mxu_dtype)],    # persistent K/V
        ),
        compiler_params=pltpu.CompilerParams(
            dimension_semantics=dims,
            vmem_limit_bytes=vmem_limit_bytes,
        ),
    )(xm, xm, wq_s, wkv)

    if Hp != H:
        out = out[..., :H]
    return out


def att_head_reference(x, wq, wk, wv):
    E = x.shape[-1]
    q = x @ wq
    k = x @ wk
    v = x @ wv
    att = jnp.einsum("btd,bsd->bts", q, k) * (E ** -0.5)
    att = jax.nn.softmax(att, axis=-1)
    return att @ v


if __name__ == "__main__":
    # Small shapes consistent with the module: batch=2, seq=8, emb_dim=32, head_size=16
    B, T, E, H = 2, 8, 32, 16

    key = jax.random.PRNGKey(0)
    kx, kq, kk, kv = jax.random.split(key, 4)

    x = jax.random.normal(kx, (B, T, E), dtype=jnp.float32)
    # Deterministic "Linear(emb_dim, head_size, bias=False)" weights, stored as (E, H).
    wq = jax.random.normal(kq, (E, H), dtype=jnp.float32) * (E ** -0.5)
    wk = jax.random.normal(kk, (E, H), dtype=jnp.float32) * (E ** -0.5)
    wv = jax.random.normal(kv, (E, H), dtype=jnp.float32) * (E ** -0.5)

    ref = att_head_reference(x, wq, wk, wv)

    # Default path: bf16 MXU inputs, f32 accumulation (recommended on v6e/v7x).
    out = jax.block_until_ready(att_head(x, wq, wk, wv))
    assert out.shape == (B, T, H)
    assert jnp.allclose(out, ref, atol=3e-2, rtol=3e-2), "mismatch vs reference (bf16 MXU)"

    # Full-f32 MXU path (closest to the f32 PyTorch module numerics; exact softmax norm).
    out32 = jax.block_until_ready(att_head(x, wq, wk, wv, mxu_dtype=jnp.float32))
    assert jnp.allclose(out32, ref, atol=2e-3, rtol=2e-3), "mismatch vs reference (f32 MXU)"

    print("KERNEL_OK")
</pallas_src>

<mosaic_0001>
module attributes {stable_mosaic.version = 11 : i64} {
  func.func @att_head_kernel(%arg0: i32, %arg1: i32, %arg2: memref<1x8x32xbf16, #tpu.memory_space<vmem>>, %arg3: memref<1x8x32xbf16, #tpu.memory_space<vmem>>, %arg4: memref<32x128xbf16, #tpu.memory_space<vmem>>, %arg5: memref<32x256xbf16, #tpu.memory_space<vmem>>, %arg6: memref<1x8x128xf32, #tpu.memory_space<vmem>>, %arg7: memref<8x256xbf16, #tpu.memory_space<vmem>>) attributes {dimension_semantics = [#tpu.dimension_semantics<parallel>, #tpu.dimension_semantics<arbitrary>], iteration_bounds = array<i64: 2, 1>, scalar_prefetch = 0 : i64, scratch_operands = 1 : i64, tpu.core_type = #tpu.core_type<tc>, window_params = [{transform_indices = @transform_0, window_bounds = array<i64: 1, 8, 32>}, {transform_indices = @transform_1, window_bounds = array<i64: 1, 8, 32>}, {pipeline_mode = #tpu.pipeline_mode<synchronous>, transform_indices = @transform_2, window_bounds = array<i64: 32, 128>}, {pipeline_mode = #tpu.pipeline_mode<synchronous>, transform_indices = @transform_3, window_bounds = array<i64: 32, 256>}, {transform_indices = @transform_4, window_bounds = array<i64: 1, 8, 128>}]} {
    %c0_i32 = arith.constant 0 : i32
    %0 = arith.cmpi eq, %arg1, %c0_i32 : i32
    %1 = arith.extui %0 : i1 to i32
    %c0_i32_0 = arith.constant 0 : i32
    %2 = arith.cmpi ne, %1, %c0_i32_0 : i32
    scf.if %2 {
      %c0_15 = arith.constant 0 : index
      %c0_16 = arith.constant 0 : index
      %c0_17 = arith.constant 0 : index
      %26 = vector.load %arg3[%c0_15, %c0_16, %c0_17] : memref<1x8x32xbf16, #tpu.memory_space<vmem>>, vector<1x8x32xbf16>
      %27 = vector.shape_cast %26 : vector<1x8x32xbf16> to vector<8x32xbf16>
      %c0_18 = arith.constant 0 : index
      %c0_19 = arith.constant 0 : index
      %28 = vector.load %arg5[%c0_18, %c0_19] : memref<32x256xbf16, #tpu.memory_space<vmem>>, vector<32x256xbf16>
      %cst_20 = arith.constant dense<0.000000e+00> : vector<8x256xf32>
      %29 = tpu.matmul %27, %28, %cst_20 {dimension_numbers = #tpu.dot_dimension_numbers<[1], [0], [0], [1], [0, 0, 1, 1], [], []>} : vector<8x32xbf16>, vector<32x256xbf16>, vector<8x256xf32> -> vector<8x256xf32>
      %30 = arith.truncf %29 : vector<8x256xf32> to vector<8x256xbf16>
      %c0_21 = arith.constant 0 : index
      %c0_22 = arith.constant 0 : index
      %31 = vector.load %arg7[%c0_21, %c0_22] : memref<8x256xbf16, #tpu.memory_space<vmem>>, vector<8x256xbf16>
      tpu.vector_store %arg7[%c0_21, %c0_22], %30 {strides = array<i32>} : memref<8x256xbf16, #tpu.memory_space<vmem>>, vector<8x256xbf16>,
    } else {
    }
    %c0 = arith.constant 0 : index
    %c0_1 = arith.constant 0 : index
    %c0_2 = arith.constant 0 : index
    %3 = vector.load %arg2[%c0, %c0_1, %c0_2] : memref<1x8x32xbf16, #tpu.memory_space<vmem>>, vector<1x8x32xbf16>
    %4 = vector.shape_cast %3 : vector<1x8x32xbf16> to vector<8x32xbf16>
    %c0_3 = arith.constant 0 : index
    %c0_4 = arith.constant 0 : index
    %5 = vector.load %arg4[%c0_3, %c0_4] : memref<32x128xbf16, #tpu.memory_space<vmem>>, vector<32x128xbf16>
    %cst = arith.constant dense<0.000000e+00> : vector<8x128xf32>
    %6 = tpu.matmul %4, %5, %cst {dimension_numbers = #tpu.dot_dimension_numbers<[1], [0], [0], [1], [0, 0, 1, 1], [], []>} : vector<8x32xbf16>, vector<32x128xbf16>, vector<8x128xf32> -> vector<8x128xf32>
    %c0_5 = arith.constant 0 : index
    %c0_6 = arith.constant 0 : index
    %7 = vector.load %arg7[%c0_5, %c0_6] : memref<8x256xbf16, #tpu.memory_space<vmem>>, vector<8x128xbf16>
    %c0_7 = arith.constant 0 : index
    %c128 = arith.constant 128 : index
    %8 = vector.load %arg7[%c0_7, %c128] : memref<8x256xbf16, #tpu.memory_space<vmem>>, vector<8x128xbf16>
    %9 = arith.truncf %6 : vector<8x128xf32> to vector<8x128xbf16>
    %cst_8 = arith.constant dense<0.000000e+00> : vector<8x8xf32>
    %10 = tpu.matmul %9, %7, %cst_8 {dimension_numbers = #tpu.dot_dimension_numbers<[1], [1], [0], [0], [0, 0, 1, 0], [], []>} : vector<8x128xbf16>, vector<8x128xbf16>, vector<8x8xf32> -> vector<8x8xf32>
    %cst_9 = arith.constant dense<0xFF800000> : vector<8xf32>
    %11 = vector.multi_reduction <maximumf>, %10, %cst_9 [1] : vector<8x8xf32> to vector<8xf32>
    %12 = vector.shape_cast %11 : vector<8xf32> to vector<8x1xf32>
    %13 = vector.broadcast %12 : vector<8x1xf32> to vector<8x8xf32>
    %14 = arith.subf %10, %13 : vector<8x8xf32>
    %15 = math.exp %14 : vector<8x8xf32>
    %cst_10 = arith.constant dense<0.000000e+00> : vector<8xf32>
    %16 = vector.multi_reduction <add>, %15, %cst_10 [1] : vector<8x8xf32> to vector<8xf32>
    %17 = vector.shape_cast %16 : vector<8xf32> to vector<8x1xf32>
    %18 = arith.truncf %15 : vector<8x8xf32> to vector<8x8xbf16>
    %cst_11 = arith.constant dense<0.000000e+00> : vector<8x128xf32>
    %19 = tpu.matmul %18, %8, %cst_11 {dimension_numbers = #tpu.dot_dimension_numbers<[1], [0], [0], [1], [0, 0, 1, 1], [], []>} : vector<8x8xbf16>, vector<8x128xbf16>, vector<8x128xf32> -> vector<8x128xf32>
    %20 = tpu.reciprocal %17 {approx = true} : vector<8x1xf32> -> vector<8x1xf32>
    %21 = vector.broadcast %20 : vector<8x1xf32> to vector<8x128xf32>
    %22 = arith.mulf %19, %21 : vector<8x128xf32>
    %c0_12 = arith.constant 0 : index
    %c0_13 = arith.constant 0 : index
    %c0_14 = arith.constant 0 : index
    %23 = vector.load %arg6[%c0_12, %c0_13, %c0_14] : memref<1x8x128xf32, #tpu.memory_space<vmem>>, vector<1x8x128xf32>
    %24 = vector.shape_cast %23 : vector<1x8x128xf32> to vector<8x128xf32>
    %25 = vector.shape_cast %22 : vector<8x128xf32> to vector<1x8x128xf32>
    tpu.vector_store %arg6[%c0_12, %c0_13, %c0_14], %25 {strides = array<i32>} : memref<1x8x128xf32, #tpu.memory_space<vmem>>, vector<1x8x128xf32>,
    return
  }
  func.func @transform_0(%arg0: i32, %arg1: i32) -> (i32, i32, i32) {
    %c0_i32 = arith.constant 0 : i32
    %c0_i32_0 = arith.constant 0 : i32
    return %arg0, %arg1, %c0_i32 : i32, i32, i32
  }
  func.func @transform_1(%arg0: i32, %arg1: i32) -> (i32, i32, i32) {
    %c0_i32 = arith.constant 0 : i32
    %c0_i32_0 = arith.constant 0 : i32
    %c0_i32_1 = arith.constant 0 : i32
    return %arg0, %c0_i32, %c0_i32_0 : i32, i32, i32
  }
  func.func @transform_2(%arg0: i32, %arg1: i32) -> (i32, i32) {
    %c0_i32 = arith.constant 0 : i32
    %c0_i32_0 = arith.constant 0 : i32
    %c0_i32_1 = arith.constant 0 : i32
    return %c0_i32, %c0_i32_0 : i32, i32
  }
  func.func @transform_3(%arg0: i32, %arg1: i32) -> (i32, i32) {
    %c0_i32 = arith.constant 0 : i32
    %c0_i32_0 = arith.constant 0 : i32
    %c0_i32_1 = arith.constant 0 : i32
    return %c0_i32, %c0_i32_0 : i32, i32
  }
  func.func @transform_4(%arg0: i32, %arg1: i32) -> (i32, i32, i32) {
    %c0_i32 = arith.constant 0 : i32
    %c0_i32_0 = arith.constant 0 : i32
    return %arg0, %arg1, %c0_i32 : i32, i32, i32
  }
}

</mosaic_0001>

<llo_original>
// kernel: tpu_custom_call.1
$region0: #{tpu_custom_call.1}
  #allocation0 [shape = 'u32[]', space=smem, size = 0x4, offset = 0x4, fixed_abs, tag = 'smem constant byte address 0x4 - core index']
  #allocation1 [shape = 'u32[144,128]{1,0:T(1,128)}', space=vmem, size = 0x12000, scoped, tag = 'internal scratch']
  #allocation2 [shape = 'bf16[8,256]{1,0:T(8,128)(2,1)}', space=vmem, size = 0x1000, scoped, tag = 'scratch operand']
  %s0 = inlined_call_operand.hbm [shape: bf16[2,8,32], index: 0, kind: input, shape index: {}]
  %s1 = inlined_call_operand.hbm [shape: bf16[2,8,32], index: 1, kind: input, shape index: {}]
  %s2 = inlined_call_operand.hbm [shape: bf16[32,128], index: 2, kind: input, shape index: {}]
  %s3 = inlined_call_operand.hbm [shape: bf16[32,256], index: 3, kind: input, shape index: {}]
  %s4 = inlined_call_operand.hbm [shape: f32[2,8,128], index: 4, kind: output, shape index: {}]
  %s5 = sld [smem:[#allocation0]]
  $region69: #{tpu_custom_call.1} parent=0
    _
  %s7 = ssub.s32 1, %s5
  %s8 = scalar_select 0, %s7, %s5
  $region1: #{tpu_custom_call.1} parent=0
    #allocation3 [shape = 'u8[4096]{0}', space=vmem, size = 0x1000, scoped, tag = 'input window, operand 0']
    #allocation4 [shape = 's32[2]{0}', space=sflag, size = 0x8, scoped, tag = 'scoped memory for tpu_custom_call.1']
    #allocation5 [shape = 's32[2]{0}', space=sflag, size = 0x8, scoped, tag = 'scoped memory for tpu_custom_call.1']
    #allocation6 [shape = 'u8[4096]{0}', space=vmem, size = 0x1000, scoped, tag = 'input window, operand 1']
    #allocation7 [shape = 's32[2]{0}', space=sflag, size = 0x8, scoped, tag = 'scoped memory for tpu_custom_call.1']
    #allocation8 [shape = 'u8[8192]{0}', space=vmem, size = 0x2000, scoped, tag = 'input window, operand 2, single buffered']
    #allocation9 [shape = 'u8[16384]{0}', space=vmem, size = 0x4000, scoped, tag = 'input window, operand 3, single buffered']
    #allocation10 [shape = 's32[1]{0}', space=sflag, size = 0x4, scoped, tag = 'scoped memory for tpu_custom_call.1']
    #allocation11 [shape = 'u8[8192]{0}', space=vmem, size = 0x2000, scoped, tag = 'output window, operand 0']
    %9 = vsyncpa [#allocation4], 0
    %s10 = scalar_lea.sflag [#allocation4], 1
    %11 = vsyncpa %s10, 0
    %12 = vsyncpa [#allocation7], 0
    %s13 = scalar_lea.sflag [#allocation7], 1
    %14 = vsyncpa %s13, 0
    %15 = vsyncpa [#allocation10], 0
    %16 = vsyncpa [#allocation5], 0
    %s17 = scalar_lea.sflag [#allocation5], 1
    %18 = vsyncpa %s17, 0
    loop: start=0, step=1, limit=4
    $region2: #{tpu_custom_call.1} parent=1 // loop_pre_header
      _
    $region3: #{tpu_custom_call.1} parent=1 // loop_header
      %s20 = sphi 0, %s24
      %p21 = scmp.ge.s32.totalorder %s20, 4
      %s27 = sphi 0, %s39
      %s28 = sphi 0, %s35
      %s29 = sphi 0, %s27
      %s30 = sphi 0, %s28
      %s31 = sphi 0, %s29
      %s32 = sphi 0, %s30
      %s44 = sphi 0, %s46
      %s47 = sphi 0, %s44
      %s48 = sphi 0, %s47
      %s64 = sphi 0, %s48
      %s70 = sphi 0, %s72
      %s73 = sphi 0, %s70
      %s74 = sphi 0, %s73
      %s90 = sphi 0, %s74
      %s94 = sphi 0, %s94
      %s96 = sphi 0, %s94
      %s97 = sphi 0, %s96
      %s111 = sphi 0, %s97
      %s115 = sphi 0, %s115
      %s117 = sphi 0, %s115
      %s118 = sphi 0, %s117
      %s132 = sphi 0, %s118
      %s140 = sphi 0, %s142
      %s143 = sphi 0, %s140
      %s144 = sphi 0, %s143
      %s160 = sphi 0, %s144
    $region4: #{tpu_custom_call.1} parent=1 // loop_header_branch
      %23 = sbr.rel (%p21) target = $region8
    $region5: #{tpu_custom_call.1} parent=1 // loop_body
      %s25 = ssub.s32 %s20, 1
      %s26 = ssub.s32 %s20, 2
      %s33 = sadd.s32 1, %s28
      %p34 = scmp.ge.s32.totalorder %s33, 1
      %s35 = scalar_select %p34, 0, %s33
      %s36 = sadd.s32 1, %s27
      %s37 = scalar_select %p34, %s36, %s27
      %p38 = scmp.ge.s32.totalorder %s37, 2
      %s39 = scalar_select %p38, 0, %s37
      %s40 = ssub.s32 %s27, %s39
      %s41 = ssub.s32 %s28, %s35
      %s42 = sor.u32 %s40, %s41
      %p43 = scmp.eq.s32.totalorder %s42, 0
      %s45 = sadd.s32 %s44, 1
      %s46 = scalar_select %p43, %s44, %s45
      %p49 = pneg %p43
      %p50 = scmp.eq.s32.totalorder %s20, 1
      %p51 = por %p49, %p50
      %p52 = scmp.ne.s32.totalorder %s44, %s47
      %p53 = scmp.eq.s32.totalorder %s20, 0
      %p54 = por %p52, %p53
      %p55 = scmp.ne.s32.totalorder %s44, %s47
      %p56 = scmp.eq.s32.totalorder %s25, 1
      %p57 = por %p55, %p56
      %p58 = scmp.ne.s32.totalorder %s47, %s48
      %p59 = scmp.eq.s32.totalorder %s25, 0
      %p60 = por %p58, %p59
      %p61 = scmp.ne.s32.totalorder %s47, %s48
      %p62 = scmp.eq.s32.totalorder %s26, 1
      %p63 = por %p61, %p62
      %p65 = scmp.ne.s32.totalorder %s48, %s64
      %p66 = scmp.eq.s32.totalorder %s26, 0
      %p67 = por %p65, %p66
      %s68 = ssub.s32 %s27, %s39
      %p69 = scmp.eq.s32.totalorder %s68, 0
      %s71 = sadd.s32 %s70, 1
      %s72 = scalar_select %p69, %s70, %s71
      %p75 = pneg %p69
      %p76 = scmp.eq.s32.totalorder %s20, 1
      %p77 = por %p75, %p76
      %p78 = scmp.ne.s32.totalorder %s70, %s73
      %p79 = scmp.eq.s32.totalorder %s20, 0
      %p80 = por %p78, %p79
      %p81 = scmp.ne.s32.totalorder %s70, %s73
      %p82 = scmp.eq.s32.totalorder %s25, 1
      %p83 = por %p81, %p82
      %p84 = scmp.ne.s32.totalorder %s73, %s74
      %p85 = scmp.eq.s32.totalorder %s25, 0
      %p86 = por %p84, %p85
      %p87 = scmp.ne.s32.totalorder %s73, %s74
      %p88 = scmp.eq.s32.totalorder %s26, 1
      %p89 = por %p87, %p88
      %p91 = scmp.ne.s32.totalorder %s74, %s90
      %p92 = scmp.eq.s32.totalorder %s26, 0
      %p93 = por %p91, %p92
      %s95 = sadd.s32 %s94, 1
      %p98 = scmp.eq.s32.totalorder %s20, 1
      %p99 = scmp.ne.s32.totalorder %s94, %s96
      %p100 = scmp.eq.s32.totalorder %s20, 0
      %p101 = por %p99, %p100
      %p102 = scmp.ne.s32.totalorder %s94, %s96
      %p103 = scmp.eq.s32.totalorder %s25, 1
      %p104 = por %p102, %p103
      %p105 = scmp.ne.s32.totalorder %s96, %s97
      %p106 = scmp.eq.s32.totalorder %s25, 0
      %p107 = por %p105, %p106
      %p108 = scmp.ne.s32.totalorder %s96, %s97
      %p109 = scmp.eq.s32.totalorder %s26, 1
      %p110 = por %p108, %p109
      %p112 = scmp.ne.s32.totalorder %s97, %s111
      %p113 = scmp.eq.s32.totalorder %s26, 0
      %p114 = por %p112, %p113
      %s116 = sadd.s32 %s115, 1
      %p119 = scmp.eq.s32.totalorder %s20, 1
      %p120 = scmp.ne.s32.totalorder %s115, %s117
      %p121 = scmp.eq.s32.totalorder %s20, 0
      %p122 = por %p120, %p121
      %p123 = scmp.ne.s32.totalorder %s115, %s117
      %p124 = scmp.eq.s32.totalorder %s25, 1
      %p125 = por %p123, %p124
      %p126 = scmp.ne.s32.totalorder %s117, %s118
      %p127 = scmp.eq.s32.totalorder %s25, 0
      %p128 = por %p126, %p127
      %p129 = scmp.ne.s32.totalorder %s117, %s118
      %p130 = scmp.eq.s32.totalorder %s26, 1
      %p131 = por %p129, %p130
      %p133 = scmp.ne.s32.totalorder %s118, %s132
      %p134 = scmp.eq.s32.totalorder %s26, 0
      %p135 = por %p133, %p134
      %s136 = ssub.s32 %s27, %s39
      %s137 = ssub.s32 %s28, %s35
      %s138 = sor.u32 %s136, %s137
      %p139 = scmp.eq.s32.totalorder %s138, 0
      %s141 = sadd.s32 %s140, 1
      %s142 = scalar_select %p139, %s140, %s141
      %p145 = pneg %p139
      %p146 = scmp.eq.s32.totalorder %s20, 1
      %p147 = por %p145, %p146
      %p148 = scmp.ne.s32.totalorder %s140, %s143
      %p149 = scmp.eq.s32.totalorder %s20, 0
      %p150 = por %p148, %p149
      %p151 = scmp.ne.s32.totalorder %s140, %s143
      %p152 = scmp.eq.s32.totalorder %s25, 1
      %p153 = por %p151, %p152
      %p154 = scmp.ne.s32.totalorder %s143, %s144
      %p155 = scmp.eq.s32.totalorder %s25, 0
      %p156 = por %p154, %p155
      %p157 = scmp.ne.s32.totalorder %s143, %s144
      %p158 = scmp.eq.s32.totalorder %s26, 1
      %p159 = por %p157, %p158
      %p161 = scmp.ne.s32.totalorder %s144, %s160
      %p162 = scmp.eq.s32.totalorder %s26, 0
      %p163 = por %p161, %p162
      %p164 = scmp.le.s32.totalorder 1, %s20
      %p165 = scmp.lt.s32.totalorder %s20, 3
      %p166 = pnand %p164, %p165
      %p167 = pneg %p166
      // Predicated region
      $region9: #{tpu_custom_call.1} parent=5 // pred_check
        _
      $region10: #{tpu_custom_call.1} parent=5 // pred_check_branch
        %169 = sbr.rel (%p166) target = $region12
      $region11: #{tpu_custom_call.1} parent=5 // pred_region
        %s170 = ssub.s32 %s20, 1
        // Predicated region
        $region13: #{tpu_custom_call.1} parent=11 // pred_check
          %p171 = pneg %p107
        $region14: #{tpu_custom_call.1} parent=11 // pred_check_branch
          %173 = sbr.rel (%p171) target = $region16
        $region15: #{tpu_custom_call.1} parent=11 // pred_region
          %s175 = ssub.s32 256, 256
          %176 = vsyncadd [#allocation7], %s175
          %s177 = sshll.u32 [#allocation8], 4
          %s178 = int_to_ptr.vmem [resolvable:$true] %s177
          %183 = dma.hbm_to_vmem [thread:$0]  %s2, 256, %s178, [#allocation7], 64, 64, 4
        $region16: #{tpu_custom_call.1} parent=11 // pred_fallthru
          _
        // Predicated region
        $region17: #{tpu_custom_call.1} parent=11 // pred_check
          %p184 = pneg %p128
        $region18: #{tpu_custom_call.1} parent=11 // pred_check_branch
          %186 = sbr.rel (%p184) target = $region20
        $region19: #{tpu_custom_call.1} parent=11 // pred_region
          %s188 = ssub.s32 512, 512
          %189 = vsyncadd [#allocation10], %s188
          %s190 = sshll.u32 [#allocation9], 4
          %s191 = int_to_ptr.vmem [resolvable:$true] %s190
          %196 = dma.hbm_to_vmem [thread:$0]  %s3, 512, %s191, [#allocation10], 128, 128, 8
        $region20: #{tpu_custom_call.1} parent=11 // pred_fallthru
          _
      $region12: #{tpu_custom_call.1} parent=5 // pred_fallthru
        _
      %p197 = scmp.lt.s32.totalorder %s20, 2
      // Predicated region
      $region21: #{tpu_custom_call.1} parent=5 // pred_check
        %p198 = pneg %p197
      $region22: #{tpu_custom_call.1} parent=5 // pred_check_branch
        %200 = sbr.rel (%p198) target = $region24
      $region23: #{tpu_custom_call.1} parent=5 // pred_region
        // Predicated region
        $region25: #{tpu_custom_call.1} parent=23 // pred_check
          %p201 = pneg %p54
        $region26: #{tpu_custom_call.1} parent=23 // pred_check_branch
          %203 = sbr.rel (%p201) target = $region28
        $region27: #{tpu_custom_call.1} parent=23 // pred_region
          %s204 = sand.u32 %s44, 1
          %s205 = scalar_lea.sflag [#allocation4], %s204
          %s206 = sand.u32 %s44, 1
          %s207 = smul.addr %s206, 4
          %s208 = scalar_lea.vmem [#allocation3], %s207
          %s210 = ssub.s32 64, 64
          %211 = vsyncadd %s205, %s210
          %s212 = sadd.s32 %s28, %s27
          %s213 = smul.addr %s212, 64
          %s214 = scalar_lea.hbm %s0, %s213
          %s216 = sshll.u32 %s208, 4
          %s217 = int_to_ptr.vmem [resolvable:$true] %s216
          %219 = dma.hbm_to_vmem [thread:$0]  %s214, 64, %s217, %s205
        $region28: #{tpu_custom_call.1} parent=23 // pred_fallthru
          _
        // Predicated region
        $region29: #{tpu_custom_call.1} parent=23 // pred_check
          %p220 = pneg %p80
        $region30: #{tpu_custom_call.1} parent=23 // pred_check_branch
          %222 = sbr.rel (%p220) target = $region32
        $region31: #{tpu_custom_call.1} parent=23 // pred_region
          %s223 = sand.u32 %s20, 1
          %s224 = scalar_lea.sflag [#allocation7], %s223
          %s225 = sand.u32 %s70, 1
          %s226 = smul.addr %s225, 4
          %s227 = scalar_lea.vmem [#allocation6], %s226
          %s229 = ssub.s32 64, 64
          %230 = vsyncadd %s224, %s229
          %s231 = smul.addr %s27, 64
          %s232 = scalar_lea.hbm %s1, %s231
          %s234 = sshll.u32 %s227, 4
          %s235 = int_to_ptr.vmem [resolvable:$true] %s234
          %237 = dma.hbm_to_vmem [thread:$0]  %s232, 64, %s235, %s224
        $region32: #{tpu_custom_call.1} parent=23 // pred_fallthru
          _
      $region24: #{tpu_custom_call.1} parent=5 // pred_fallthru
        _
      %p238 = scmp.le.s32.totalorder 1, %s20
      %p239 = scmp.lt.s32.totalorder %s20, 3
      %p240 = pnand %p238, %p239
      %p241 = pneg %p240
      // Predicated region
      $region33: #{tpu_custom_call.1} parent=5 // pred_check
        _
      $region34: #{tpu_custom_call.1} parent=5 // pred_check_branch
        %243 = sbr.rel (%p240) target = $region36
      $region35: #{tpu_custom_call.1} parent=5 // pred_region
        %s244 = ssub.s32 %s20, 1
        %s245 = sand.u32 %s47, 1
        %s246 = scalar_lea.sflag [#allocation4], %s245
        %s247 = sand.u32 %s47, 1
        %s248 = smul.addr %s247, 4
        %s249 = scalar_lea.vmem [#allocation3], %s248
        // Predicated region
        $region37: #{tpu_custom_call.1} parent=35 // pred_check
          %p250 = pneg %p60
        $region38: #{tpu_custom_call.1} parent=35 // pred_check_branch
          %252 = sbr.rel (%p250) target = $region40
        $region39: #{tpu_custom_call.1} parent=35 // pred_region
          %253 = dma.done %s246, 64
        $region40: #{tpu_custom_call.1} parent=35 // pred_fallthru
          _
        %s254 = sand.u32 %s25, 1
        %s255 = scalar_lea.sflag [#allocation7], %s254
        %s256 = sand.u32 %s73, 1
        %s257 = smul.addr %s256, 4
        %s258 = scalar_lea.vmem [#allocation6], %s257
        // Predicated region
        $region41: #{tpu_custom_call.1} parent=35 // pred_check
          %p259 = pneg %p86
        $region42: #{tpu_custom_call.1} parent=35 // pred_check_branch
          %261 = sbr.rel (%p259) target = $region44
        $region43: #{tpu_custom_call.1} parent=35 // pred_region
          %262 = dma.done %s255, 64
        $region44: #{tpu_custom_call.1} parent=35 // pred_fallthru
          _
        // Predicated region
        $region45: #{tpu_custom_call.1} parent=35 // pred_check
          %p263 = pneg %p107
        $region46: #{tpu_custom_call.1} parent=35 // pred_check_branch
          %265 = sbr.rel (%p263) target = $region48
        $region47: #{tpu_custom_call.1} parent=35 // pred_region
          %266 = dma.done [#allocation7], 256
        $region48: #{tpu_custom_call.1} parent=35 // pred_fallthru
          _
        // Predicated region
        $region49: #{tpu_custom_call.1} parent=35 // pred_check
          %p267 = pneg %p128
        $region50: #{tpu_custom_call.1} parent=35 // pred_check_branch
          %269 = sbr.rel (%p267) target = $region52
        $region51: #{tpu_custom_call.1} parent=35 // pred_region
          %270 = dma.done [#allocation10], 512
        $region52: #{tpu_custom_call.1} parent=35 // pred_fallthru
          _
        %s271 = sand.u32 %s47, 1
        %s272 = scalar_lea.sflag [#allocation4], %s271
        %s273 = sand.u32 %s47, 1
        %s274 = smul.addr %s273, 4
        %s275 = scalar_lea.vmem [#allocation3], %s274
        %p276 = pneg %p60
        %p277 = pneg %p57
        %s278 = sand.u32 %s25, 1
        %s279 = scalar_lea.sflag [#allocation7], %s278
        %s280 = sand.u32 %s73, 1
        %s281 = smul.addr %s280, 4
        %s282 = scalar_lea.vmem [#allocation6], %s281
        %p283 = pneg %p86
        %p284 = pneg %p83
        %p285 = pneg %p107
        %p286 = pneg %p104
        %p287 = pneg %p128
        %p288 = pneg %p125
        %p289 = pneg %p156
        %p290 = pneg %p153
        %s291 = sand.u32 %s143, 1
        %s292 = scalar_lea.sflag [#allocation5], %s291
        %s293 = sand.u32 %s143, 1
        %s294 = smul.addr %s293, 8
        %s295 = scalar_lea.vmem [#allocation11], %s294
        %p297 = scmp.eq.s32.totalorder %s30, 0
        // Predicated region
        $region53: #{tpu_custom_call.1} parent=35 // pred_check
          %p298 = pneg %p297
        $region54: #{tpu_custom_call.1} parent=35 // pred_check_branch
          %300 = sbr.rel (%p298) target = $region56
        $region55: #{tpu_custom_call.1} parent=35 // pred_region
          %v301 = vld [vmem:[%s258] sm:$0xf]
          %v302 = vld [vmem:[#allocation9] sm:$0xff]
          %v303 = vld [vmem:[#allocation9 + $0x8] sm:$0xff]
          %v304 = vld [vmem:[#allocation9 + $0x10] sm:$0xff]
          %v305 = vld [vmem:[#allocation9 + $0x18] sm:$0xff]
          %v310 = vunpack.c.l.b16 %v302
          %v311 = vunpack.c.h.b16 %v302
          %v312 = vunpack.c.l.b16 %v303
          %v313 = vunpack.c.h.b16 %v303
          %v314 = vunpack.c.l.b16 %v304
          %v315 = vunpack.c.h.b16 %v304
          %v316 = vunpack.c.l.b16 %v305
          %v317 = vunpack.c.h.b16 %v305
          %v318 = vpack.c.b16 %v312, %v310
          %v319 = vpack.c.b16 %v313, %v311
          %v320 = vpack.c.b16 %v316, %v314
          %v321 = vpack.c.b16 %v317, %v315
          %vm326 = vcmask 261120
          %v328 = vsel %vm326, %v301, 0
          %330 = vmatprep.subr.bf16.mxu0 0
          %331 = vmatpush1.bf16.msra.mxu0 0
          %332 = vmatprep.subr.bf16.mxu0 0
          %333 = vmatpush1.bf16.msra.mxu0 0
          %334 = vmatprep.subr.bf16.mxu0 0
          %335 = vmatpush1.bf16.msra.mxu0 0
          %336 = vmatprep.subr.bf16.mxu0 0
          %337 = vmatpush1.bf16.msra.mxu0 0
          %338 = vmatprep.subr.bf16.mxu0 0
          %339 = vmatpush1.bf16.msra.mxu0 0
          %340 = vmatprep.subr.bf16.mxu0 0
          %341 = vmatpush1.bf16.msra.mxu0 0
          %342 = vmatprep.subr.bf16.mxu0 %v321
          %343 = vmatpush1.bf16.msra.mxu0 %v320
          %344 = vmatprep.subr.bf16.mxu0 %v319
          %345 = vmatpush1.bf16.msra.mxu0 %v318
          %346 = vmatprep.subr.bf16.mxu0 0
          %347 = vmatpush2.bf16.msra.mxu0 0
          %348 = vmatprep.subr.bf16.mxu0 0
          %349 = vmatpush2.bf16.msra.mxu0 0
          %350 = vmatprep.subr.bf16.mxu0 0
          %351 = vmatpush2.bf16.msra.mxu0 0
          %352 = vmatprep.subr.bf16.mxu0 0
          %353 = vmatpush2.bf16.msra.mxu0 0
          %354 = vmatprep.subr.bf16.mxu0 0
          %355 = vmatpush2.bf16.msra.mxu0 0
          %356 = vmatprep.subr.bf16.mxu0 0
          %357 = vmatpush2.bf16.msra.mxu0 0
          %358 = vmatprep.subr.bf16.mxu0 0
          %359 = vmatpush2.bf16.msra.mxu0 0
          %360 = vmatprep.subr.bf16.mxu0 0
          %361 = vmatpush2.bf16.msra.mxu0 0
          %362 = vmatprep.mubr.bf16.mxu0 0
          %363 = vmatmul.mubr.bf16.gmra.mxu0 %v328
          %v364 = vpop.f32.mrf.mxu0
          %v365 = vadd.f32 0.0, %v364
          %v366 = vpop.f32.mrf.mxu0
          %v367 = vadd.f32 0.0, %v366
          %v368 = vpop.f32.mrf.mxu0
          %v369 = vpop.f32.mrf.mxu0
          %370 = vdwg.mxu0
          %v371 = vpack.c.bf16 %v365, %v365
          %v372 = vpack.c.bf16 %v367, %v367
          %v375 = vunpack.c.l.b16 %v371
          %v376 = vunpack.c.l.b16 %v372
          %v377 = vpack.c.b16 %v376, %v375
          %379 = vst [vmem:[#allocation2] sm:$0xff] %v377
        $region56: #{tpu_custom_call.1} parent=35 // pred_fallthru
          _
        %v380 = vld [vmem:[%s249] sm:$0xf]
        %v381 = vld [vmem:[#allocation8] sm:$0xf]
        %v382 = vld [vmem:[#allocation8 + $0x4] sm:$0xf]
        %v383 = vld [vmem:[#allocation8 + $0x8] sm:$0xf]
        %v384 = vld [vmem:[#allocation8 + $0xc] sm:$0xf]
        %v389 = vunpack.c.l.b16 %v381
        %v390 = vunpack.c.l.b16 %v382
        %v391 = vunpack.c.l.b16 %v383
        %v392 = vunpack.c.l.b16 %v384
        %v393 = vpack.c.b16 %v390, %v389
        %v394 = vpack.c.b16 %v392, %v391
        %vm397 = vcmask 261120
        %v399 = vsel %vm397, %v380, 0
        %401 = vmatprep.subr.bf16.mxu0 0
        %402 = vmatpush1.bf16.msra.mxu0 0
        %403 = vmatprep.subr.bf16.mxu0 0
        %404 = vmatpush1.bf16.msra.mxu0 0
        %405 = vmatprep.subr.bf16.mxu0 0
        %406 = vmatpush1.bf16.msra.mxu0 0
        %407 = vmatprep.subr.bf16.mxu0 0
        %408 = vmatpush1.bf16.msra.mxu0 0
        %409 = vmatprep.subr.bf16.mxu0 0
        %410 = vmatpush1.bf16.msra.mxu0 0
        %411 = vmatprep.subr.bf16.mxu0 0
        %412 = vmatpush1.bf16.msra.mxu0 0
        %413 = vmatprep.subr.bf16.mxu0 0
        %414 = vmatpush1.bf16.msra.mxu0 %v394
        %415 = vmatprep.subr.bf16.mxu0 0
        %416 = vmatpush1.bf16.msra.mxu0 %v393
        %417 = vmatprep.subr.bf16.mxu0 0
        %418 = vmatpush2.bf16.msra.mxu0 0
        %419 = vmatprep.subr.bf16.mxu0 0
        %420 = vmatpush2.bf16.msra.mxu0 0
        %421 = vmatprep.subr.bf16.mxu0 0
        %422 = vmatpush2.bf16.msra.mxu0 0
        %423 = vmatprep.subr.bf16.mxu0 0
        %424 = vmatpush2.bf16.msra.mxu0 0
        %425 = vmatprep.subr.bf16.mxu0 0
        %426 = vmatpush2.bf16.msra.mxu0 0
        %427 = vmatprep.subr.bf16.mxu0 0
        %428 = vmatpush2.bf16.msra.mxu0 0
        %429 = vmatprep.subr.bf16.mxu0 0
        %430 = vmatpush2.bf16.msra.mxu0 0
        %431 = vmatprep.subr.bf16.mxu0 0
        %432 = vmatpush2.bf16.msra.mxu0 0
        %433 = vmatprep.mubr.bf16.mxu0 0
        %434 = vmatmul.mubr.bf16.gmra.mxu0 %v399
        %v435 = vpop.f32.mrf.mxu0
        %v436 = vadd.f32 0.0, %v435
        %v437 = vpop.f32.mrf.mxu0
        %v438 = vpop.f32.mrf.mxu0
        %v439 = vpop.f32.mrf.mxu0
        %440 = vdwg.mxu0
        %v441 = vld [vmem:[#allocation2] sm:$0xf]
        %v442 = vld [vmem:[#allocation2 + $0x4] sm:$0xf]
        %v443 = vpack.c.bf16 %v436, %v436
        %444 = vmatprep.subr.bf16.mxu0 0
        %445 = vmatpush1.bf16.xpose.msra.mxu0 0
        %446 = vmatprep.subr.bf16.mxu0 0
        %447 = vmatpush1.bf16.xpose.msra.mxu0 0
        %448 = vmatprep.subr.bf16.mxu0 0
        %449 = vmatpush1.bf16.xpose.msra.mxu0 0
        %450 = vmatprep.subr.bf16.mxu0 0
        %451 = vmatpush1.bf16.xpose.msra.mxu0 0
        %452 = vmatprep.subr.bf16.mxu0 0
        %453 = vmatpush1.bf16.xpose.msra.mxu0 0
        %454 = vmatprep.subr.bf16.mxu0 0
        %455 = vmatpush1.bf16.xpose.msra.mxu0 0
        %456 = vmatprep.subr.bf16.mxu0 0
        %457 = vmatpush1.bf16.xpose.msra.mxu0 0
        %458 = vmatprep.subr.bf16.mxu0 0
        %459 = vmatpush1.bf16.xpose.msra.mxu0 %v441
        %460 = vmatprep.subr.bf16.mxu0 0
        %461 = vmatpush2.bf16.xpose.msra.mxu0 0
        %462 = vmatprep.subr.bf16.mxu0 0
        %463 = vmatpush2.bf16.xpose.msra.mxu0 0
        %464 = vmatprep.subr.bf16.mxu0 0
        %465 = vmatpush2.bf16.xpose.msra.mxu0 0
        %466 = vmatprep.subr.bf16.mxu0 0
        %467 = vmatpush2.bf16.xpose.msra.mxu0 0
        %468 = vmatprep.subr.bf16.mxu0 0
        %469 = vmatpush2.bf16.xpose.msra.mxu0 0
        %470 = vmatprep.subr.bf16.mxu0 0
        %471 = vmatpush2.bf16.xpose.msra.mxu0 0
        %472 = vmatprep.subr.bf16.mxu0 0
        %473 = vmatpush2.bf16.xpose.msra.mxu0 0
        %474 = vmatprep.subr.bf16.mxu0 0
        %475 = vmatpush2.bf16.xpose.msra.mxu0 0
        %476 = vmatprep.mubr.bf16.mxu0 0
        %477 = vmatmul.mubr.bf16.gmra.mxu0 %v443
        %v478 = vpop.f32.mrf.mxu0
        %v479 = vadd.f32 0.0, %v478
        %v480 = vpop.f32.mrf.mxu0
        %v481 = vpop.f32.mrf.mxu0
        %v482 = vpop.f32.mrf.mxu0
        %483 = vdwg.mxu0
        %vm484 = vcmask 64512
        %v485 = vsel %vm484, %v479, -inf
        %486 = vmax.xlane.f32.xlu0 %v485
        %v487 = vpop.xlane.xlu0 %486
        %v488 = vsub.f32 %v479, %v487
        %v489 = vmul.f32 %v488, 1.442695
        %v490 = vpow.pop %v489
        %v491 = vsel %vm484, %v490, 0.0
        %492 = vadd.xlane.f32.xlu0 %v491
        %v493 = vpop.xlane.xlu0 %492
        %v494 = vpack.c.bf16 %v490, %v490
        %v496 = vsel %vm484, %v494, 0
        %vm498 = vcmask 1043456
        %v500 = vsel %vm498, %v442, 0
        %502 = vmatprep.subr.bf16.mxu0 0
        %503 = vmatpush1.bf16.msra.mxu0 0
        %504 = vmatprep.subr.bf16.mxu0 0
        %505 = vmatpush1.bf16.msra.mxu0 0
        %506 = vmatprep.subr.bf16.mxu0 0
        %507 = vmatpush1.bf16.msra.mxu0 0
        %508 = vmatprep.subr.bf16.mxu0 0
        %509 = vmatpush1.bf16.msra.mxu0 0
        %510 = vmatprep.subr.bf16.mxu0 0
        %511 = vmatpush1.bf16.msra.mxu0 0
        %512 = vmatprep.subr.bf16.mxu0 0
        %513 = vmatpush1.bf16.msra.mxu0 0
        %514 = vmatprep.subr.bf16.mxu0 0
        %515 = vmatpush1.bf16.msra.mxu0 0
        %516 = vmatprep.subr.bf16.mxu0 0
        %517 = vmatpush1.bf16.msra.mxu0 %v500
        %518 = vmatprep.subr.bf16.mxu0 0
        %519 = vmatpush2.bf16.msra.mxu0 0
        %520 = vmatprep.subr.bf16.mxu0 0
        %521 = vmatpush2.bf16.msra.mxu0 0
        %522 = vmatprep.subr.bf16.mxu0 0
        %523 = vmatpush2.bf16.msra.mxu0 0
        %524 = vmatprep.subr.bf16.mxu0 0
        %525 = vmatpush2.bf16.msra.mxu0 0
        %526 = vmatprep.subr.bf16.mxu0 0
        %527 = vmatpush2.bf16.msra.mxu0 0
        %528 = vmatprep.subr.bf16.mxu0 0
        %529 = vmatpush2.bf16.msra.mxu0 0
        %530 = vmatprep.subr.bf16.mxu0 0
        %531 = vmatpush2.bf16.msra.mxu0 0
        %532 = vmatprep.subr.bf16.mxu0 0
        %533 = vmatpush2.bf16.msra.mxu0 0
        %534 = vmatprep.mubr.bf16.mxu0 0
        %535 = vmatmul.mubr.bf16.gmra.mxu0 %v496
        %v536 = vpop.f32.mrf.mxu0
        %v537 = vadd.f32 0.0, %v536
        %v538 = vpop.f32.mrf.mxu0
        %v539 = vpop.f32.mrf.mxu0
        %v540 = vpop.f32.mrf.mxu0
        %541 = vdwg.mxu0
        %v542 = vrcp.pop %v493
        %v543 = vmul.f32 %v537, %v542
        %544 = vst [vmem:[%s295] sm:$0xff] %v543
        %s545 = sand.u32 %s143, 1
        %s546 = scalar_lea.sflag [#allocation5], %s545
        %s547 = sand.u32 %s143, 1
        %s548 = smul.addr %s547, 8
        %s549 = scalar_lea.vmem [#allocation11], %s548
        // Predicated region
        $region57: #{tpu_custom_call.1} parent=35 // pred_check
          %p550 = pneg %p153
        $region58: #{tpu_custom_call.1} parent=35 // pred_check_branch
          %552 = sbr.rel (%p550) target = $region60
        $region59: #{tpu_custom_call.1} parent=35 // pred_region
          %s554 = ssub.s32 128, 128
          %555 = vsyncadd %s546, %s554
          %s556 = sadd.s32 %s30, %s29
          %s557 = smul.addr %s556, 128
          %s558 = scalar_lea.hbm %s4, %s557
          %s560 = sshll.u32 %s549, 4
          %s561 = int_to_ptr.vmem [resolvable:$true] %s560
          %563 = dma.vmem_to_hbm [thread:$0]  %s561, 128, %s558, %s546
        $region60: #{tpu_custom_call.1} parent=35 // pred_fallthru
          _
      $region36: #{tpu_custom_call.1} parent=5 // pred_fallthru
        _
      %p564 = scmp.le.s32.totalorder 2, %s20
      // Predicated region
      $region61: #{tpu_custom_call.1} parent=5 // pred_check
        %p565 = pneg %p564
      $region62: #{tpu_custom_call.1} parent=5 // pred_check_branch
        %567 = sbr.rel (%p565) target = $region64
      $region63: #{tpu_custom_call.1} parent=5 // pred_region
        %s568 = ssub.s32 %s20, 2
        // Predicated region
        $region65: #{tpu_custom_call.1} parent=63 // pred_check
          %p569 = pneg %p159
        $region66: #{tpu_custom_call.1} parent=63 // pred_check_branch
          %571 = sbr.rel (%p569) target = $region68
        $region67: #{tpu_custom_call.1} parent=63 // pred_region
          %s572 = sand.u32 %s144, 1
          %s573 = scalar_lea.sflag [#allocation5], %s572
          %s574 = sand.u32 %s144, 1
          %s575 = smul.addr %s574, 8
          %s576 = scalar_lea.vmem [#allocation11], %s575
          %577 = dma.done %s573, 128
        $region68: #{tpu_custom_call.1} parent=63 // pred_fallthru
          _
      $region64: #{tpu_custom_call.1} parent=5 // pred_fallthru
        _
    $region6: #{tpu_custom_call.1} parent=1 // loop_footer
      %s24 = sadd.s32 1, %s20
    $region7: #{tpu_custom_call.1} parent=1 // loop_footer_branch
      %19 = sbr.rel target = $region3
    $region8: #{tpu_custom_call.1} parent=1 // loop_exit
      _
    %578 = vsyncpa [#allocation4], 1
    %s579 = scalar_lea.sflag [#allocation4], 1
    %580 = vsyncpa %s579, 1
    %581 = vsyncpa [#allocation7], 1
    %s582 = scalar_lea.sflag [#allocation7], 1
    %583 = vsyncpa %s582, 1
    %584 = vsyncpa [#allocation10], 1
    %585 = vsyncpa [#allocation5], 1
    %s586 = scalar_lea.sflag [#allocation5], 1
    %587 = vsyncpa %s586, 1

</llo_original>
